<compile_context>
chip_gen: v6e
topology: v6e:2x2x1
jax: 0.10.0
libtpu: 0.0.40
codegen_flags: <defaults>
</compile_context>

<pallas_src>
import jax
import jax.numpy as jnp
from jax.experimental import pallas as pl
from jax.experimental.pallas import tpu as pltpu


def _round_up(x, m):
    return ((x + m - 1) // m) * m


def _linear_kernel_single_k(x_ref, w_ref, b_ref, o_ref):
    # x_ref: (tm, K), w_ref: (K, tn) [weight pre-transposed], b_ref: (1, tn)
    # Entire contraction fits in one tile: no accumulator, one store.
    o_ref[...] = (
        jnp.dot(x_ref[...], w_ref[...], preferred_element_type=jnp.float32)
        + b_ref[...]
    ).astype(o_ref.dtype)


def _linear_kernel_multi_k(x_ref, w_ref, b_ref, o_ref, acc_ref):
    # x_ref: (tm, tk), w_ref: (tk, tn), b_ref: (1, tn)
    # o_ref: (tm, tn), acc_ref: f32 (tm, tn) VMEM scratch
    k = pl.program_id(2)

    @pl.when(k == 0)
    def _init():
        acc_ref[...] = jnp.zeros_like(acc_ref)

    acc_ref[...] += jnp.dot(
        x_ref[...], w_ref[...], preferred_element_type=jnp.float32
    )

    @pl.when(k == pl.num_programs(2) - 1)
    def _finalize():
        # Bias added exactly once (in f32), single cast on the only store.
        o_ref[...] = (acc_ref[...] + b_ref[...]).astype(o_ref.dtype)


def linear(x, weight, bias, *, tm=128, tn=128, tk=256):
    """y = x @ weight.T + bias, with weight of shape (out_features, in_features)."""
    B, in_f = x.shape
    out_f, in_f_w = weight.shape
    assert in_f == in_f_w and bias.shape == (out_f,)

    # Pre-transpose the weight once outside the kernel: RHS becomes (K, N) with
    # N on lanes -- the layout the MXU wants, and a lane-dense output.
    w_t = weight.T                     # (in_f, out_f)
    bias2d = bias.reshape(1, out_f)

    # Cap tiles for small problems while keeping MXU / vreg alignment:
    #   M tile multiple of 8 (sublanes), N/K tiles multiple of 128 (lanes).
    tm = max(8, min(tm, _round_up(B, 8)))
    tn = max(128, min(tn, _round_up(out_f, 128)))
    tk = max(128, min(tk, _round_up(in_f, 128)))

    Mp = _round_up(B, tm)
    Np = _round_up(out_f, tn)
    Kp = _round_up(in_f, tk)

    # Zero-pad to tile multiples (padded K rows/cols contribute 0 to the
    # contraction; padded M/N rows/cols are sliced away below).
    if (Mp, Kp) != (B, in_f):
        x = jnp.pad(x, ((0, Mp - B), (0, Kp - in_f)))
    if (Kp, Np) != (in_f, out_f):
        w_t = jnp.pad(w_t, ((0, Kp - in_f), (0, Np - out_f)))
    if Np != out_f:
        bias2d = jnp.pad(bias2d, ((0, 0), (0, Np - out_f)))

    n_k_steps = Kp // tk

    itemsize = jnp.dtype(x.dtype).itemsize
    cost = pl.CostEstimate(
        flops=2 * Mp * Np * Kp,
        transcendentals=0,
        bytes_accessed=(Mp * Kp + Kp * Np + Np + Mp * Np) * itemsize,
    )

    if n_k_steps == 1:
        # Fast path: whole contraction in one tile -> no scratch, no branches.
        grid = (Mp // tm, Np // tn)
        grid_spec = pltpu.PrefetchScalarGridSpec(
            num_scalar_prefetch=0,
            grid=grid,
            in_specs=[
                pl.BlockSpec((tm, Kp), lambda i, j: (i, 0)),    # x tile
                pl.BlockSpec((Kp, tn), lambda i, j: (0, j)),    # weight.T tile
                pl.BlockSpec((1, tn), lambda i, j: (0, j)),     # bias tile
            ],
            out_specs=pl.BlockSpec((tm, tn), lambda i, j: (i, j)),
            scratch_shapes=[],
        )
        kernel = _linear_kernel_single_k
        dim_sem = ("parallel", "parallel")
    else:
        grid = (Mp // tm, Np // tn, n_k_steps)
        grid_spec = pltpu.PrefetchScalarGridSpec(
            num_scalar_prefetch=0,
            grid=grid,
            in_specs=[
                pl.BlockSpec((tm, tk), lambda i, j, k: (i, k)),   # x tile
                pl.BlockSpec((tk, tn), lambda i, j, k: (k, j)),   # weight.T tile
                pl.BlockSpec((1, tn), lambda i, j, k: (0, j)),    # bias tile
            ],
            out_specs=pl.BlockSpec((tm, tn), lambda i, j, k: (i, j)),
            scratch_shapes=[pltpu.VMEM((tm, tn), jnp.float32)],
        )
        kernel = _linear_kernel_multi_k
        dim_sem = ("parallel", "parallel", "arbitrary")

    out = pl.pallas_call(
        kernel,
        out_shape=jax.ShapeDtypeStruct((Mp, Np), x.dtype),
        grid_spec=grid_spec,
        compiler_params=pltpu.CompilerParams(
            dimension_semantics=dim_sem,
            vmem_limit_bytes=32 * 1024 * 1024,
        ),
        cost_estimate=cost,
    )(x, w_t, bias2d)

    return out[:B, :out_f]


def _reference(x, weight, bias):
    # Matches the PyTorch forward: (weight @ x.T).T + bias
    return (
        jnp.matmul(weight, x.T, precision=jax.lax.Precision.HIGHEST).T + bias
    )


if __name__ == "__main__":
    key = jax.random.PRNGKey(0)
    k_x, k_w, k_b, k_x2, k_w2, k_b2 = jax.random.split(key, 6)

    # --- Small shape (single-K-step fast path) --------------------------------
    batch, in_features, out_features = 8, 32, 16
    x = jax.random.normal(k_x, (batch, in_features), dtype=jnp.float32)
    weight = jax.random.normal(k_w, (out_features, in_features), dtype=jnp.float32)
    bias = jax.random.normal(k_b, (out_features,), dtype=jnp.float32)

    y = linear(x, weight, bias)
    jax.block_until_ready(y)
    y_ref = _reference(x, weight, bias)
    assert y.shape == (batch, out_features)
    assert jnp.allclose(y, y_ref, atol=1e-2, rtol=1e-2)

    # --- Larger shape, forcing a multi-step (M, N, K) grid so the accumulator
    # init / bias-only-at-last-K path is actually exercised. ------------------
    batch2, in_features2, out_features2 = 128, 256, 128
    x2 = jax.random.normal(k_x2, (batch2, in_features2), dtype=jnp.float32)
    weight2 = jax.random.normal(k_w2, (out_features2, in_features2), dtype=jnp.float32)
    bias2 = jax.random.normal(k_b2, (out_features2,), dtype=jnp.float32)

    y2 = linear(x2, weight2, bias2, tm=64, tn=128, tk=128)
    jax.block_until_ready(y2)
    y2_ref = _reference(x2, weight2, bias2)
    assert y2.shape == (batch2, out_features2)
    assert jnp.allclose(y2, y2_ref, atol=1e-2, rtol=1e-2)

    print("KERNEL_OK")
</pallas_src>

<mosaic_0001>
module attributes {stable_mosaic.version = 11 : i64} {
  func.func @_linear_kernel_single_k(%arg0: i32, %arg1: i32, %arg2: memref<8x128xf32, #tpu.memory_space<vmem>>, %arg3: memref<128x128xf32, #tpu.memory_space<vmem>>, %arg4: memref<1x128xf32, #tpu.memory_space<vmem>>, %arg5: memref<8x128xf32, #tpu.memory_space<vmem>>) attributes {dimension_semantics = [#tpu.dimension_semantics<parallel>, #tpu.dimension_semantics<parallel>], iteration_bounds = array<i64: 1, 1>, scalar_prefetch = 0 : i64, scratch_operands = 0 : i64, tpu.core_type = #tpu.core_type<tc>, window_params = [{transform_indices = @transform_0, window_bounds = array<i64: 8, 128>}, {transform_indices = @transform_1, window_bounds = array<i64: 128, 128>}, {transform_indices = @transform_2, window_bounds = array<i64: 1, 128>}, {transform_indices = @transform_3, window_bounds = array<i64: 8, 128>}]} {
    %c0 = arith.constant 0 : index
    %c0_0 = arith.constant 0 : index
    %0 = vector.load %arg2[%c0, %c0_0] : memref<8x128xf32, #tpu.memory_space<vmem>>, vector<8x128xf32>
    %c0_1 = arith.constant 0 : index
    %c0_2 = arith.constant 0 : index
    %1 = vector.load %arg3[%c0_1, %c0_2] : memref<128x128xf32, #tpu.memory_space<vmem>>, vector<128x128xf32>
    %cst = arith.constant dense<0.000000e+00> : vector<8x128xf32>
    %2 = tpu.matmul %0, %1, %cst {dimension_numbers = #tpu.dot_dimension_numbers<[1], [0], [0], [1], [0, 0, 1, 1], [], []>} : vector<8x128xf32>, vector<128x128xf32>, vector<8x128xf32> -> vector<8x128xf32>
    %c0_3 = arith.constant 0 : index
    %c0_4 = arith.constant 0 : index
    %3 = vector.load %arg4[%c0_3, %c0_4] : memref<1x128xf32, #tpu.memory_space<vmem>>, vector<1x128xf32>
    %4 = vector.broadcast %3 : vector<1x128xf32> to vector<8x128xf32>
    %5 = arith.addf %2, %4 : vector<8x128xf32>
    %c0_5 = arith.constant 0 : index
    %c0_6 = arith.constant 0 : index
    %6 = vector.load %arg5[%c0_5, %c0_6] : memref<8x128xf32, #tpu.memory_space<vmem>>, vector<8x128xf32>
    tpu.vector_store %arg5[%c0_5, %c0_6], %5 {strides = array<i32>} : memref<8x128xf32, #tpu.memory_space<vmem>>, vector<8x128xf32>,
    return
  }
  func.func @transform_0(%arg0: i32, %arg1: i32) -> (i32, i32) {
    %c0_i32 = arith.constant 0 : i32
    %c0_i32_0 = arith.constant 0 : i32
    return %arg0, %c0_i32 : i32, i32
  }
  func.func @transform_1(%arg0: i32, %arg1: i32) -> (i32, i32) {
    %c0_i32 = arith.constant 0 : i32
    %c0_i32_0 = arith.constant 0 : i32
    return %c0_i32, %arg1 : i32, i32
  }
  func.func @transform_2(%arg0: i32, %arg1: i32) -> (i32, i32) {
    %c0_i32 = arith.constant 0 : i32
    %c0_i32_0 = arith.constant 0 : i32
    return %c0_i32, %arg1 : i32, i32
  }
  func.func @transform_3(%arg0: i32, %arg1: i32) -> (i32, i32) {
    %c0_i32 = arith.constant 0 : i32
    return %arg0, %arg1 : i32, i32
  }
}

</mosaic_0001>

<llo_original>
// kernel: tpu_custom_call.1
$region0: #{tpu_custom_call.1}
  #allocation0 [shape = 'u32[]', space=smem, size = 0x4, offset = 0x4, fixed_abs, tag = 'smem constant byte address 0x4 - core index']
  #allocation1 [shape = 'u32[144,128]{1,0:T(1,128)}', space=vmem, size = 0x12000, scoped, tag = 'internal scratch']
  %s0 = inlined_call_operand.hbm [shape: f32[8,128], index: 0, kind: input, shape index: {}]
  %s1 = inlined_call_operand.hbm [shape: f32[128,128], index: 1, kind: input, shape index: {}]
  %s2 = inlined_call_operand.vmem [shape: f32[1,128], index: 2, kind: input, shape index: {}]
  %s3 = inlined_call_operand.hbm [shape: f32[8,128], index: 3, kind: output, shape index: {}]
  %s4 = sld [smem:[#allocation0]]
  $region30: #{tpu_custom_call.1} parent=0
    _
  %s6 = ssub.s32 1, %s4
  %s7 = scalar_select 0, %s6, %s4
  $region1: #{tpu_custom_call.1} parent=0
    #allocation2 [shape = 'u8[4096]{0}', space=vmem, size = 0x1000, scoped, tag = 'input window, operand 0, single buffered']
    #allocation3 [shape = 's32[1]{0}', space=sflag, size = 0x4, scoped, tag = 'scoped memory for tpu_custom_call.1']
    #allocation4 [shape = 's32[1]{0}', space=sflag, size = 0x4, scoped, tag = 'scoped memory for tpu_custom_call.1']
    #allocation5 [shape = 'u8[65536]{0}', space=vmem, size = 0x10000, scoped, tag = 'input window, operand 1, single buffered']
    #allocation6 [shape = 's32[1]{0}', space=sflag, size = 0x4, scoped, tag = 'scoped memory for tpu_custom_call.1']
    #allocation7 [shape = 'u8[4096]{0}', space=vmem, size = 0x1000, scoped, tag = 'output window, operand 0, single buffered']
    %8 = vsyncpa [#allocation3], 0
    %9 = vsyncpa [#allocation6], 0
    %10 = vsyncpa [#allocation4], 0
    // Predicated region
    $region2: #{tpu_custom_call.1} parent=1 // pred_check
      _
    $region3: #{tpu_custom_call.1} parent=1 // pred_check_branch
      %12 = sbr.rel (0) target = $region5
    $region4: #{tpu_custom_call.1} parent=1 // pred_region
      %s14 = ssub.s32 128, 128
      %15 = vsyncadd [#allocation3], %s14
      %s17 = sshll.u32 [#allocation2], 4
      %s18 = int_to_ptr.vmem [resolvable:$true] %s17
      %20 = dma.hbm_to_vmem [thread:$0]  %s0, 128, %s18, [#allocation3]
    $region5: #{tpu_custom_call.1} parent=1 // pred_fallthru
      _
    // Predicated region
    $region6: #{tpu_custom_call.1} parent=1 // pred_check
      _
    $region7: #{tpu_custom_call.1} parent=1 // pred_check_branch
      %22 = sbr.rel (0) target = $region9
    $region8: #{tpu_custom_call.1} parent=1 // pred_region
      %s24 = ssub.s32 2048, 2048
      %25 = vsyncadd [#allocation6], %s24
      %s26 = sshll.u32 [#allocation5], 4
      %s27 = int_to_ptr.vmem [resolvable:$true] %s26
      %32 = dma.hbm_to_vmem [thread:$0]  %s1, 2048, %s27, [#allocation6], 128, 128, 8
    $region9: #{tpu_custom_call.1} parent=1 // pred_fallthru
      _
    // Predicated region
    $region10: #{tpu_custom_call.1} parent=1 // pred_check
      _
    $region11: #{tpu_custom_call.1} parent=1 // pred_check_branch
      %34 = sbr.rel (0) target = $region13
    $region12: #{tpu_custom_call.1} parent=1 // pred_region
      _
    $region13: #{tpu_custom_call.1} parent=1 // pred_fallthru
      _
    // Predicated region
    $region14: #{tpu_custom_call.1} parent=1 // pred_check
      _
    $region15: #{tpu_custom_call.1} parent=1 // pred_check_branch
      %36 = sbr.rel (0) target = $region17
    $region16: #{tpu_custom_call.1} parent=1 // pred_region
      %37 = dma.done [#allocation3], 128
    $region17: #{tpu_custom_call.1} parent=1 // pred_fallthru
      _
    // Predicated region
    $region18: #{tpu_custom_call.1} parent=1 // pred_check
      _
    $region19: #{tpu_custom_call.1} parent=1 // pred_check_branch
      %39 = sbr.rel (0) target = $region21
    $region20: #{tpu_custom_call.1} parent=1 // pred_region
      %40 = dma.done [#allocation6], 2048
    $region21: #{tpu_custom_call.1} parent=1 // pred_fallthru
      _
    %v41 = vld [vmem:[#allocation2] sm:$0xff]
    %v42 = vld [vmem:[#allocation5] sm:$0xff]
    %v43 = vld [vmem:[#allocation5 + $0x8] sm:$0xff]
    %v44 = vld [vmem:[#allocation5 + $0x10] sm:$0xff]
    %v45 = vld [vmem:[#allocation5 + $0x18] sm:$0xff]
    %v46 = vld [vmem:[#allocation5 + $0x20] sm:$0xff]
    %v47 = vld [vmem:[#allocation5 + $0x28] sm:$0xff]
    %v48 = vld [vmem:[#allocation5 + $0x30] sm:$0xff]
    %v49 = vld [vmem:[#allocation5 + $0x38] sm:$0xff]
    %v50 = vld [vmem:[#allocation5 + $0x40] sm:$0xff]
    %v51 = vld [vmem:[#allocation5 + $0x48] sm:$0xff]
    %v52 = vld [vmem:[#allocation5 + $0x50] sm:$0xff]
    %v53 = vld [vmem:[#allocation5 + $0x58] sm:$0xff]
    %v54 = vld [vmem:[#allocation5 + $0x60] sm:$0xff]
    %v55 = vld [vmem:[#allocation5 + $0x68] sm:$0xff]
    %v56 = vld [vmem:[#allocation5 + $0x70] sm:$0xff]
    %v57 = vld [vmem:[#allocation5 + $0x78] sm:$0xff]
    %v58 = vld [vmem:[%s2] sm:$0x1]
    %v60 = vlaneseq
    %v61 = vshrl.u32 %v60, 7
    %v62 = vsub.s32 0, %v61
    %v63 = vrot.slane %v58, %v62
    %65 = vmatprep.subr.mxu0 0.0
    %66 = vmatpush1.msra.mxu0 %v57
    %67 = vmatprep.subr.mxu0 0.0
    %68 = vmatpush1.msra.mxu0 %v56
    %69 = vmatprep.subr.mxu0 0.0
    %70 = vmatpush1.msra.mxu0 %v55
    %71 = vmatprep.subr.mxu0 0.0
    %72 = vmatpush1.msra.mxu0 %v54
    %73 = vmatprep.subr.mxu0 0.0
    %74 = vmatpush1.msra.mxu0 %v53
    %75 = vmatprep.subr.mxu0 0.0
    %76 = vmatpush1.msra.mxu0 %v52
    %77 = vmatprep.subr.mxu0 0.0
    %78 = vmatpush1.msra.mxu0 %v51
    %79 = vmatprep.subr.mxu0 0.0
    %80 = vmatpush1.msra.mxu0 %v50
    %81 = vmatprep.subr.mxu0 0.0
    %82 = vmatpush1.msra.mxu0 %v49
    %83 = vmatprep.subr.mxu0 0.0
    %84 = vmatpush1.msra.mxu0 %v48
    %85 = vmatprep.subr.mxu0 0.0
    %86 = vmatpush1.msra.mxu0 %v47
    %87 = vmatprep.subr.mxu0 0.0
    %88 = vmatpush1.msra.mxu0 %v46
    %89 = vmatprep.subr.mxu0 0.0
    %90 = vmatpush1.msra.mxu0 %v45
    %91 = vmatprep.subr.mxu0 0.0
    %92 = vmatpush1.msra.mxu0 %v44
    %93 = vmatprep.subr.mxu0 0.0
    %94 = vmatpush1.msra.mxu0 %v43
    %95 = vmatprep.subr.mxu0 0.0
    %96 = vmatpush1.msra.mxu0 %v42
    %97 = vmatprep.subr.mxu0 0.0
    %98 = vmatpush2.msra.mxu0 0.0
    %99 = vmatprep.subr.mxu0 0.0
    %100 = vmatpush2.msra.mxu0 0.0
    %101 = vmatprep.subr.mxu0 0.0
    %102 = vmatpush2.msra.mxu0 0.0
    %103 = vmatprep.subr.mxu0 0.0
    %104 = vmatpush2.msra.mxu0 0.0
    %105 = vmatprep.subr.mxu0 0.0
    %106 = vmatpush2.msra.mxu0 0.0
    %107 = vmatprep.subr.mxu0 0.0
    %108 = vmatpush2.msra.mxu0 0.0
    %109 = vmatprep.subr.mxu0 0.0
    %110 = vmatpush2.msra.mxu0 0.0
    %111 = vmatprep.subr.mxu0 0.0
    %112 = vmatpush2.msra.mxu0 0.0
    %113 = vmatprep.subr.mxu0 0.0
    %114 = vmatpush2.msra.mxu0 0.0
    %115 = vmatprep.subr.mxu0 0.0
    %116 = vmatpush2.msra.mxu0 0.0
    %117 = vmatprep.subr.mxu0 0.0
    %118 = vmatpush2.msra.mxu0 0.0
    %119 = vmatprep.subr.mxu0 0.0
    %120 = vmatpush2.msra.mxu0 0.0
    %121 = vmatprep.subr.mxu0 0.0
    %122 = vmatpush2.msra.mxu0 0.0
    %123 = vmatprep.subr.mxu0 0.0
    %124 = vmatpush2.msra.mxu0 0.0
    %125 = vmatprep.subr.mxu0 0.0
    %126 = vmatpush2.msra.mxu0 0.0
    %127 = vmatprep.subr.mxu0 0.0
    %128 = vmatpush2.msra.mxu0 0.0
    %129 = vmatprep.mubr.f32.mxu0 0.0
    %130 = vmatmul.mubr.f32.gmra.mxu0 %v41
    %v131 = vpop.f32.mrf.mxu0
    %v132 = vadd.f32 %v63, %v131
    %v133 = vpop.f32.mrf.mxu0
    %134 = vdwg.mxu0
    %135 = vst [vmem:[#allocation7] sm:$0xff] %v132
    // Predicated region
    $region22: #{tpu_custom_call.1} parent=1 // pred_check
      _
    $region23: #{tpu_custom_call.1} parent=1 // pred_check_branch
      %137 = sbr.rel (0) target = $region25
    $region24: #{tpu_custom_call.1} parent=1 // pred_region
      %s139 = ssub.s32 128, 128
      %140 = vsyncadd [#allocation4], %s139
      %s142 = sshll.u32 [#allocation7], 4
      %s143 = int_to_ptr.vmem [resolvable:$true] %s142
      %145 = dma.vmem_to_hbm [thread:$0]  %s143, 128, %s3, [#allocation4]
    $region25: #{tpu_custom_call.1} parent=1 // pred_fallthru
      _
    // Predicated region
    $region26: #{tpu_custom_call.1} parent=1 // pred_check
      _
    $region27: #{tpu_custom_call.1} parent=1 // pred_check_branch
      %147 = sbr.rel (0) target = $region29
    $region28: #{tpu_custom_call.1} parent=1 // pred_region
      %148 = dma.done [#allocation4], 128
    $region29: #{tpu_custom_call.1} parent=1 // pred_fallthru
      _
    %149 = vsyncpa [#allocation3], 1
    %150 = vsyncpa [#allocation6], 1
    %151 = vsyncpa [#allocation4], 1

</llo_original>
